<compile_context>
chip_gen: v5e
topology: v5e:2x2
jax: 0.10.0
libtpu: 0.0.40
codegen_flags: <defaults>
</compile_context>

<pallas_src>
import functools

import jax
import jax.numpy as jnp
from jax.experimental import pallas as pl
from jax.experimental.pallas import tpu as pltpu


def _faa_kernel(*refs, bb, l1, l2, has_rowmask):
    if has_rowmask:
        x_ref, y_ref, v_ref, mask_ref, rowmask_ref, w_ref, o_ref = refs
    else:
        x_ref, y_ref, v_ref, mask_ref, w_ref, o_ref = refs
        rowmask_ref = None

    f32 = jnp.float32
    bf16 = jnp.bfloat16

    w = w_ref[...]                                            # (D, D) bf16

    # Batch-folded projections: (bb*l, D) @ (D, D), f32 accumulation, ReLU in f32.
    sx = jnp.maximum(jnp.dot(x_ref[...], w, preferred_element_type=f32), 0.0)
    sy = jnp.maximum(jnp.dot(y_ref[...], w, preferred_element_type=f32), 0.0)

    # Leading-dim-only reshapes (layout-free: l1, l2 are multiples of 8).
    sx3 = sx.astype(bf16).reshape(bb, l1, -1)                 # (bb, l1, D)
    sy3 = sy.astype(bf16).reshape(bb, l2, -1)                 # (bb, l2, D)
    v3 = v_ref[...].reshape(bb, l2, -1)                       # (bb, l2, DV)

    # Per-batch scores: contract last dims, batch dim stays a batch dim.
    s = jnp.einsum("bid,bjd->bij", sx3, sy3,
                   preferred_element_type=f32)                # (bb, l1, l2) f32

    # masked_softmax over the l1 axis (PyTorch dim=1); mask is per (batch, l2).
    s_max = jnp.max(s, axis=1, keepdims=True)                 # (bb, 1, l2)
    e0 = jnp.exp(s - s_max)                                   # (bb, l1, l2)
    if has_rowmask:
        # Zero contributions from L1-padding rows before the column sums.
        e0 = e0 * rowmask_ref[...][None]                      # (1, l1, 1) bcast
    col_sum = jnp.sum(e0, axis=1, keepdims=True)              # (bb, 1, l2)
    m = mask_ref[0]                                           # (bb, 1, l2)
    # Fused mask * reciprocal (EUP): one tiny vector op, one full-slab multiply.
    scale = m * pl.reciprocal(m * col_sum + 1e-10, approx=True)
    alpha = e0 * scale                                        # (bb, l1, l2)

    out = jnp.einsum("bij,bjd->bid", alpha.astype(bf16), v3,
                     preferred_element_type=f32)              # (bb, l1, DV)
    o_ref[...] = out.astype(o_ref.dtype)


def _round_up(n, m):
    return ((n + m - 1) // m) * m


def _tpu_generation():
    try:
        kind = jax.devices()[0].device_kind.lower()
    except Exception:
        return 6
    for g in (7, 6, 5, 4):
        if (f"v{g}" in kind) or (f"tpu{g}" in kind):
            return g
    return 6


def _vmem_estimate(bb, l1, l2, d, dv):
    """Rough per-step VMEM bytes; scales linearly in bb (per-batch score stage)."""
    bf, f4 = 2, 4
    io = 2 * (bf * bb * (l1 * d + l2 * d + l2 * dv)   # double-buffered bf16 inputs
              + f4 * bb * l2                          # mask block
              + f4 * bb * l1 * dv)                    # f32 output block
    io += 2 * bf * d * d                              # shared W
    temps = (f4 * bb * (l1 * d + l2 * d + 4 * l1 * l2 + 2 * l2 + l1 * dv)
             + bf * bb * (l1 * d + l2 * d + l1 * l2))
    return io + temps


def _pick_batch_block(B, l1, l2, d, dv, gen):
    """Batches folded per grid step (MXU M-dim fill), generation-aware."""
    row_target = 256 if gen <= 5 else 512             # v5e 4x128 MXU vs v6e/v7x 2x256
    target = max(1, row_target // max(l1, 1))
    if gen >= 7 and B >= 2:
        target = min(target, max(1, B // 2))          # keep >=2 steps: 2 TCs on v7x
    budget = (40 << 20) if gen >= 7 else (80 << 20)   # v7x has 64 MiB physical VMEM
    bb = 1
    for c in range(1, min(B, max(target, 1)) + 1):
        if B % c == 0 and _vmem_estimate(c, l1, l2, d, dv) <= budget:
            bb = c
    return bb


def fully_aware_attention(x, y, values, mask, W):
    B, L1, D = x.shape
    _, L2, DV = values.shape
    assert y.shape == (B, L2, D)
    assert mask.shape == (B, L2)
    assert W.shape == (D, D)

    gen = _tpu_generation()

    # Wrapper-side padding to sublane multiples (replaces the old bb=B fallback).
    L1p, L2p = _round_up(L1, 8), _round_up(L2, 8)
    pad_l1, pad_l2 = L1p - L1, L2p - L2

    bb = _pick_batch_block(B, L1p, L2p, D, DV, gen)
    G = B // bb

    bf16 = jnp.bfloat16
    f32 = jnp.float32

    xp = x if pad_l1 == 0 else jnp.pad(x, ((0, 0), (0, pad_l1), (0, 0)))
    yp = y if pad_l2 == 0 else jnp.pad(y, ((0, 0), (0, pad_l2), (0, 0)))
    vp = values if pad_l2 == 0 else jnp.pad(values, ((0, 0), (0, pad_l2), (0, 0)))
    mp = mask if pad_l2 == 0 else jnp.pad(mask, ((0, 0), (0, pad_l2)))

    # bf16 MXU operands (halve HBM->VMEM DMA); mask stays f32 for softmax math.
    x_flat = xp.astype(bf16).reshape(B * L1p, D)
    y_flat = yp.astype(bf16).reshape(B * L2p, D)
    v_flat = vp.astype(bf16).reshape(B * L2p, DV)
    w_bf16 = W.astype(bf16)
    mask4 = mp.astype(f32).reshape(G, bb, 1, L2p)

    operands = [x_flat, y_flat, v_flat, mask4]
    in_specs = [
        pl.BlockSpec((bb * L1p, D), lambda g: (g, 0)),         # x (flat)
        pl.BlockSpec((bb * L2p, D), lambda g: (g, 0)),         # y (flat)
        pl.BlockSpec((bb * L2p, DV), lambda g: (g, 0)),        # values (flat)
        pl.BlockSpec((1, bb, 1, L2p), lambda g: (g, 0, 0, 0)),  # mask
    ]

    has_rowmask = pad_l1 > 0
    if has_rowmask:
        rowmask = (jnp.arange(L1p) < L1).astype(f32).reshape(L1p, 1)
        operands.append(rowmask)
        in_specs.append(pl.BlockSpec((L1p, 1), lambda g: (0, 0)))

    operands.append(w_bf16)
    in_specs.append(pl.BlockSpec((D, D), lambda g: (0, 0)))    # W (shared)

    kernel = functools.partial(_faa_kernel, bb=bb, l1=L1p, l2=L2p,
                               has_rowmask=has_rowmask)

    cap = (48 << 20) if gen >= 7 else (100 << 20)
    vmem_limit = int(min(cap, max(32 << 20,
                                  2 * _vmem_estimate(bb, L1p, L2p, D, DV))))

    out = pl.pallas_call(
        kernel,
        out_shape=jax.ShapeDtypeStruct((B, L1p, DV), f32),
        grid_spec=pltpu.PrefetchScalarGridSpec(
            num_scalar_prefetch=0,
            grid=(G,),
            in_specs=in_specs,
            out_specs=pl.BlockSpec((bb, L1p, DV), lambda g: (g, 0, 0)),
        ),
        compiler_params=pltpu.CompilerParams(
            dimension_semantics=("parallel",),
            vmem_limit_bytes=vmem_limit),
    )(*operands)

    return out[:, :L1, :] if pad_l1 else out


def _reference(x, y, values, mask, W, mxu_dtype=jnp.float32):
    """Module semantics; mxu_dtype lets us mirror the kernel's bf16 MXU operands."""
    f32 = jnp.float32
    xc, yc, vc, wc = (t.astype(mxu_dtype) for t in (x, y, values, W))
    sx = jnp.maximum(jnp.einsum("bld,de->ble", xc, wc,
                                preferred_element_type=f32), 0.0)
    sy = jnp.maximum(jnp.einsum("bld,de->ble", yc, wc,
                                preferred_element_type=f32), 0.0)
    s = jnp.einsum("bid,bjd->bij", sx.astype(mxu_dtype), sy.astype(mxu_dtype),
                   preferred_element_type=f32)
    s_max = jnp.max(s, axis=1, keepdims=True)
    e = jnp.exp(s - s_max) * mask[:, None, :]
    alpha = e / (jnp.sum(e, axis=1, keepdims=True) + 1e-10)
    return jnp.einsum("bij,bjd->bid", alpha.astype(mxu_dtype), vc,
                      preferred_element_type=f32)


if __name__ == "__main__":
    def run_case(B, L1, L2, D, DV):
        key = jax.random.PRNGKey(0)
        kx, ky, kv, km, kw = jax.random.split(key, 5)

        x = jax.random.normal(kx, (B, L1, D), dtype=jnp.float32)
        y = jax.random.normal(ky, (B, L2, D), dtype=jnp.float32)
        values = jax.random.normal(kv, (B, L2, DV), dtype=jnp.float32)
        mask = (jax.random.uniform(km, (B, L2)) > 0.3).astype(jnp.float32)
        mask = mask.at[:, 0].set(1.0)

        # Deterministic kaiming_normal_(W, a=0.01): std = sqrt(2 / ((1+a^2)*fan_in))
        a = 0.01
        std = (2.0 / ((1.0 + a * a) * D)) ** 0.5
        W = std * jax.random.normal(kw, (D, D), dtype=jnp.float32)

        out = jax.block_until_ready(fully_aware_attention(x, y, values, mask, W))
        assert out.shape == (B, L1, DV)
        assert not bool(jnp.any(jnp.isnan(out)))

        # Matched-precision reference (same bf16 MXU operands / f32 accumulation).
        ref_bf16 = _reference(x, y, values, mask, W, mxu_dtype=jnp.bfloat16)
        assert jnp.allclose(out, ref_bf16, atol=2e-2, rtol=2e-2)

        # Loose sanity check against the exact f32 module semantics (bf16 MXU
        # operands are a deliberate precision/perf trade).
        ref_f32 = _reference(x, y, values, mask, W, mxu_dtype=jnp.float32)
        assert float(jnp.max(jnp.abs(out - ref_f32))) < 0.25

    run_case(B=2, L1=16, L2=8, D=32, DV=32)   # aligned shapes
    run_case(B=2, L1=12, L2=6, D=32, DV=32)   # exercises wrapper-side L1/L2 padding

    print("KERNEL_OK")
</pallas_src>

<mosaic_0001>
module attributes {stable_mosaic.version = 11 : i64} {
  func.func @_faa_kernel(%arg0: i32, %arg1: memref<32x32xbf16, #tpu.memory_space<vmem>>, %arg2: memref<16x32xbf16, #tpu.memory_space<vmem>>, %arg3: memref<16x32xbf16, #tpu.memory_space<vmem>>, %arg4: memref<1x2x1x8xf32, #tpu.memory_space<vmem>>, %arg5: memref<32x32xbf16, #tpu.memory_space<vmem>>, %arg6: memref<2x16x32xf32, #tpu.memory_space<vmem>>) attributes {dimension_semantics = [#tpu.dimension_semantics<parallel>], iteration_bounds = array<i64: 1>, scalar_prefetch = 0 : i64, scratch_operands = 0 : i64, tpu.core_type = #tpu.core_type<tc>, window_params = [{transform_indices = @transform_0, window_bounds = array<i64: 32, 32>}, {transform_indices = @transform_1, window_bounds = array<i64: 16, 32>}, {transform_indices = @transform_2, window_bounds = array<i64: 16, 32>}, {transform_indices = @transform_3, window_bounds = array<i64: 1, 2, 1, 8>}, {pipeline_mode = #tpu.pipeline_mode<synchronous>, transform_indices = @transform_4, window_bounds = array<i64: 32, 32>}, {transform_indices = @transform_5, window_bounds = array<i64: 2, 16, 32>}]} {
    %c0 = arith.constant 0 : index
    %c0_0 = arith.constant 0 : index
    %0 = vector.load %arg5[%c0, %c0_0] : memref<32x32xbf16, #tpu.memory_space<vmem>>, vector<32x32xbf16>
    %c0_1 = arith.constant 0 : index
    %c0_2 = arith.constant 0 : index
    %1 = vector.load %arg1[%c0_1, %c0_2] : memref<32x32xbf16, #tpu.memory_space<vmem>>, vector<32x32xbf16>
    %cst = arith.constant dense<0.000000e+00> : vector<32x32xf32>
    %2 = tpu.matmul %1, %0, %cst {dimension_numbers = #tpu.dot_dimension_numbers<[1], [0], [0], [1], [0, 0, 1, 1], [], []>} : vector<32x32xbf16>, vector<32x32xbf16>, vector<32x32xf32> -> vector<32x32xf32>
    %cst_3 = arith.constant 0.000000e+00 : f32
    %3 = vector.broadcast %cst_3 : f32 to vector<32x32xf32>
    %4 = arith.maximumf %2, %3 : vector<32x32xf32>
    %c0_4 = arith.constant 0 : index
    %c0_5 = arith.constant 0 : index
    %5 = vector.load %arg2[%c0_4, %c0_5] : memref<16x32xbf16, #tpu.memory_space<vmem>>, vector<16x32xbf16>
    %cst_6 = arith.constant dense<0.000000e+00> : vector<16x32xf32>
    %6 = tpu.matmul %5, %0, %cst_6 {dimension_numbers = #tpu.dot_dimension_numbers<[1], [0], [0], [1], [0, 0, 1, 1], [], []>} : vector<16x32xbf16>, vector<32x32xbf16>, vector<16x32xf32> -> vector<16x32xf32>
    %cst_7 = arith.constant 0.000000e+00 : f32
    %7 = vector.broadcast %cst_7 : f32 to vector<16x32xf32>
    %8 = arith.maximumf %6, %7 : vector<16x32xf32>
    %9 = arith.truncf %4 : vector<32x32xf32> to vector<32x32xbf16>
    %10 = vector.shape_cast %9 : vector<32x32xbf16> to vector<2x16x32xbf16>
    %11 = arith.truncf %8 : vector<16x32xf32> to vector<16x32xbf16>
    %12 = vector.shape_cast %11 : vector<16x32xbf16> to vector<2x8x32xbf16>
    %c0_8 = arith.constant 0 : index
    %c0_9 = arith.constant 0 : index
    %13 = vector.load %arg3[%c0_8, %c0_9] : memref<16x32xbf16, #tpu.memory_space<vmem>>, vector<16x32xbf16>
    %14 = vector.shape_cast %13 : vector<16x32xbf16> to vector<2x8x32xbf16>
    "tpu.trace_start"() <{level = 10 : i32, message = "bid,bjd->bij"}> : () -> ()
    %cst_10 = arith.constant dense<0.000000e+00> : vector<2x16x8xf32>
    %15 = tpu.matmul %10, %12, %cst_10 {dimension_numbers = #tpu.dot_dimension_numbers<[2], [2], [1], [1], [0, 0, 0, 1, 1, 1], [0], [0]>} : vector<2x16x32xbf16>, vector<2x8x32xbf16>, vector<2x16x8xf32> -> vector<2x16x8xf32>
    "tpu.trace_stop"() : () -> ()
    %cst_11 = arith.constant dense<0xFF800000> : vector<2x8xf32>
    %16 = vector.multi_reduction <maximumf>, %15, %cst_11 [1] : vector<2x16x8xf32> to vector<2x8xf32>
    %17 = vector.shape_cast %16 : vector<2x8xf32> to vector<2x1x8xf32>
    %18 = vector.broadcast %17 : vector<2x1x8xf32> to vector<2x16x8xf32>
    %19 = arith.subf %15, %18 : vector<2x16x8xf32>
    %20 = math.exp %19 : vector<2x16x8xf32>
    %cst_12 = arith.constant dense<0.000000e+00> : vector<2x8xf32>
    %21 = vector.multi_reduction <add>, %20, %cst_12 [1] : vector<2x16x8xf32> to vector<2x8xf32>
    %22 = vector.shape_cast %21 : vector<2x8xf32> to vector<2x1x8xf32>
    %c0_13 = arith.constant 0 : index
    %c0_14 = arith.constant 0 : index
    %c0_15 = arith.constant 0 : index
    %c0_16 = arith.constant 0 : index
    %23 = vector.load %arg4[%c0_13, %c0_14, %c0_15, %c0_16] : memref<1x2x1x8xf32, #tpu.memory_space<vmem>>, vector<1x2x1x8xf32>
    %24 = vector.shape_cast %23 : vector<1x2x1x8xf32> to vector<2x1x8xf32>
    %25 = arith.mulf %24, %22 : vector<2x1x8xf32>
    %cst_17 = arith.constant 1.000000e-10 : f32
    %26 = vector.broadcast %cst_17 : f32 to vector<2x1x8xf32>
    %27 = arith.addf %25, %26 : vector<2x1x8xf32>
    %28 = tpu.reciprocal %27 {approx = true} : vector<2x1x8xf32> -> vector<2x1x8xf32>
    %29 = arith.mulf %24, %28 : vector<2x1x8xf32>
    %30 = vector.broadcast %29 : vector<2x1x8xf32> to vector<2x16x8xf32>
    %31 = arith.mulf %20, %30 : vector<2x16x8xf32>
    %32 = arith.truncf %31 : vector<2x16x8xf32> to vector<2x16x8xbf16>
    "tpu.trace_start"() <{level = 10 : i32, message = "bij,bjd->bid"}> : () -> ()
    %cst_18 = arith.constant dense<0.000000e+00> : vector<2x16x32xf32>
    %33 = tpu.matmul %32, %14, %cst_18 {dimension_numbers = #tpu.dot_dimension_numbers<[2], [1], [1], [2], [0, 0, 0, 1, 1, 2], [0], [0]>} : vector<2x16x8xbf16>, vector<2x8x32xbf16>, vector<2x16x32xf32> -> vector<2x16x32xf32>
    "tpu.trace_stop"() : () -> ()
    %c0_19 = arith.constant 0 : index
    %c0_20 = arith.constant 0 : index
    %c0_21 = arith.constant 0 : index
    %34 = vector.load %arg6[%c0_19, %c0_20, %c0_21] : memref<2x16x32xf32, #tpu.memory_space<vmem>>, vector<2x16x32xf32>
    tpu.vector_store %arg6[%c0_19, %c0_20, %c0_21], %33 {strides = array<i32>} : memref<2x16x32xf32, #tpu.memory_space<vmem>>, vector<2x16x32xf32>,
    return
  }
  func.func @transform_0(%arg0: i32) -> (i32, i32) {
    %c0_i32 = arith.constant 0 : i32
    %c0_i32_0 = arith.constant 0 : i32
    return %arg0, %c0_i32 : i32, i32
  }
  func.func @transform_1(%arg0: i32) -> (i32, i32) {
    %c0_i32 = arith.constant 0 : i32
    %c0_i32_0 = arith.constant 0 : i32
    return %arg0, %c0_i32 : i32, i32
  }
  func.func @transform_2(%arg0: i32) -> (i32, i32) {
    %c0_i32 = arith.constant 0 : i32
    %c0_i32_0 = arith.constant 0 : i32
    return %arg0, %c0_i32 : i32, i32
  }
  func.func @transform_3(%arg0: i32) -> (i32, i32, i32, i32) {
    %c0_i32 = arith.constant 0 : i32
    %c0_i32_0 = arith.constant 0 : i32
    %c0_i32_1 = arith.constant 0 : i32
    %c0_i32_2 = arith.constant 0 : i32
    return %arg0, %c0_i32, %c0_i32_0, %c0_i32_1 : i32, i32, i32, i32
  }
  func.func @transform_4(%arg0: i32) -> (i32, i32) {
    %c0_i32 = arith.constant 0 : i32
    %c0_i32_0 = arith.constant 0 : i32
    %c0_i32_1 = arith.constant 0 : i32
    return %c0_i32, %c0_i32_0 : i32, i32
  }
  func.func @transform_5(%arg0: i32) -> (i32, i32, i32) {
    %c0_i32 = arith.constant 0 : i32
    %c0_i32_0 = arith.constant 0 : i32
    %c0_i32_1 = arith.constant 0 : i32
    return %arg0, %c0_i32, %c0_i32_0 : i32, i32, i32
  }
}

</mosaic_0001>

<llo_original>
// kernel: tpu_custom_call.1
$region0: #{tpu_custom_call.1}
  #allocation0 [shape = 'u32[]', space=smem, size = 0x4, offset = 0x4, fixed_abs, tag = 'smem constant byte address 0x4 - core index']
  #allocation1 [shape = 'u32[72,128]{1,0:T(1,128)}', space=vmem, size = 0x9000, scoped, tag = 'internal scratch']
  %s0 = inlined_call_operand.hbm [shape: bf16[32,32], index: 0, kind: input, shape index: {}]
  %s1 = inlined_call_operand.hbm [shape: bf16[16,32], index: 1, kind: input, shape index: {}]
  %s2 = inlined_call_operand.hbm [shape: bf16[16,32], index: 2, kind: input, shape index: {}]
  %s3 = inlined_call_operand.vmem [shape: f32[1,2,1,8], index: 3, kind: input, shape index: {}]
  %s4 = inlined_call_operand.hbm [shape: bf16[32,32], index: 4, kind: input, shape index: {}]
  %s5 = inlined_call_operand.hbm [shape: f32[2,16,32], index: 5, kind: output, shape index: {}]
  %s6 = sld [smem:[#allocation0]]
  $region46: #{tpu_custom_call.1} parent=0
    _
  %s8 = ssub.s32 1, %s6
  %s9 = scalar_select 0, %s8, %s6
  $region1: #{tpu_custom_call.1} parent=0
    #allocation2 [shape = 'u8[8192]{0}', space=vmem, size = 0x2000, scoped, tag = 'input window, operand 0, single buffered']
    #allocation3 [shape = 's32[1]{0}', space=sflag, size = 0x4, scoped, tag = 'scoped memory for tpu_custom_call.1']
    #allocation4 [shape = 's32[1]{0}', space=sflag, size = 0x4, scoped, tag = 'scoped memory for tpu_custom_call.1']
    #allocation5 [shape = 'u8[4096]{0}', space=vmem, size = 0x1000, scoped, tag = 'input window, operand 1, single buffered']
    #allocation6 [shape = 's32[1]{0}', space=sflag, size = 0x4, scoped, tag = 'scoped memory for tpu_custom_call.1']
    #allocation7 [shape = 'u8[4096]{0}', space=vmem, size = 0x1000, scoped, tag = 'input window, operand 2, single buffered']
    #allocation8 [shape = 'u8[8192]{0}', space=vmem, size = 0x2000, scoped, tag = 'input window, operand 4, single buffered']
    #allocation9 [shape = 's32[1]{0}', space=sflag, size = 0x4, scoped, tag = 'scoped memory for tpu_custom_call.1']
    #allocation10 [shape = 'u8[16384]{0}', space=vmem, size = 0x4000, scoped, tag = 'output window, operand 0, single buffered']
    %10 = vsyncpa [#allocation3], 0
    %11 = vsyncpa [#allocation6], 0
    %12 = vsyncpa [#allocation9], 0
    %13 = vsyncpa [#allocation4], 0
    // Predicated region
    $region2: #{tpu_custom_call.1} parent=1 // pred_check
      _
    $region3: #{tpu_custom_call.1} parent=1 // pred_check_branch
      %15 = sbr.rel (0) target = $region5
    $region4: #{tpu_custom_call.1} parent=1 // pred_region
      %17 = vsyncadd [#allocation3], 0
      %s18 = sshll.u32 %s0, 4
      %s19 = int_to_ptr.hbm [resolvable:$true] %s18
      %s20 = sshll.u32 [#allocation2], 4
      %s21 = int_to_ptr.vmem [resolvable:$true] %s20
      %26 = dma.hbm_to_vmem [thread:$0]  %s19, 256, %s21, [#allocation3], 64, 64, 4
    $region5: #{tpu_custom_call.1} parent=1 // pred_fallthru
      _
    // Predicated region
    $region6: #{tpu_custom_call.1} parent=1 // pred_check
      _
    $region7: #{tpu_custom_call.1} parent=1 // pred_check_branch
      %28 = sbr.rel (0) target = $region9
    $region8: #{tpu_custom_call.1} parent=1 // pred_region
      %30 = vsyncadd [#allocation6], 0
      %s31 = sshll.u32 %s1, 4
      %s32 = int_to_ptr.hbm [resolvable:$true] %s31
      %s33 = sshll.u32 [#allocation5], 4
      %s34 = int_to_ptr.vmem [resolvable:$true] %s33
      %39 = dma.hbm_to_vmem [thread:$0]  %s32, 128, %s34, [#allocation6], 64, 64, 4
    $region9: #{tpu_custom_call.1} parent=1 // pred_fallthru
      _
    // Predicated region
    $region10: #{tpu_custom_call.1} parent=1 // pred_check
      _
    $region11: #{tpu_custom_call.1} parent=1 // pred_check_branch
      %41 = sbr.rel (0) target = $region13
    $region12: #{tpu_custom_call.1} parent=1 // pred_region
      %43 = vsyncadd [#allocation6], 0
      %s44 = sshll.u32 %s2, 4
      %s45 = int_to_ptr.hbm [resolvable:$true] %s44
      %s46 = sshll.u32 [#allocation7], 4
      %s47 = int_to_ptr.vmem [resolvable:$true] %s46
      %52 = dma.hbm_to_vmem [thread:$0]  %s45, 128, %s47, [#allocation6], 64, 64, 4
    $region13: #{tpu_custom_call.1} parent=1 // pred_fallthru
      _
    // Predicated region
    $region14: #{tpu_custom_call.1} parent=1 // pred_check
      _
    $region15: #{tpu_custom_call.1} parent=1 // pred_check_branch
      %54 = sbr.rel (0) target = $region17
    $region16: #{tpu_custom_call.1} parent=1 // pred_region
      _
    $region17: #{tpu_custom_call.1} parent=1 // pred_fallthru
      _
    // Predicated region
    $region18: #{tpu_custom_call.1} parent=1 // pred_check
      _
    $region19: #{tpu_custom_call.1} parent=1 // pred_check_branch
      %56 = sbr.rel (0) target = $region21
    $region20: #{tpu_custom_call.1} parent=1 // pred_region
      %58 = vsyncadd [#allocation9], 0
      %s59 = sshll.u32 %s4, 4
      %s60 = int_to_ptr.hbm [resolvable:$true] %s59
      %s61 = sshll.u32 [#allocation8], 4
      %s62 = int_to_ptr.vmem [resolvable:$true] %s61
      %67 = dma.hbm_to_vmem [thread:$0]  %s60, 256, %s62, [#allocation9], 64, 64, 4
    $region21: #{tpu_custom_call.1} parent=1 // pred_fallthru
      _
    // Predicated region
    $region22: #{tpu_custom_call.1} parent=1 // pred_check
      _
    $region23: #{tpu_custom_call.1} parent=1 // pred_check_branch
      %69 = sbr.rel (0) target = $region25
    $region24: #{tpu_custom_call.1} parent=1 // pred_region
      %71 = dma.done [#allocation3], 256
    $region25: #{tpu_custom_call.1} parent=1 // pred_fallthru
      _
    // Predicated region
    $region26: #{tpu_custom_call.1} parent=1 // pred_check
      _
    $region27: #{tpu_custom_call.1} parent=1 // pred_check_branch
      %73 = sbr.rel (0) target = $region29
    $region28: #{tpu_custom_call.1} parent=1 // pred_region
      %75 = dma.done [#allocation6], 128
    $region29: #{tpu_custom_call.1} parent=1 // pred_fallthru
      _
    // Predicated region
    $region30: #{tpu_custom_call.1} parent=1 // pred_check
      _
    $region31: #{tpu_custom_call.1} parent=1 // pred_check_branch
      %77 = sbr.rel (0) target = $region33
    $region32: #{tpu_custom_call.1} parent=1 // pred_region
      %79 = dma.done [#allocation6], 128
    $region33: #{tpu_custom_call.1} parent=1 // pred_fallthru
      _
    // Predicated region
    $region34: #{tpu_custom_call.1} parent=1 // pred_check
      _
    $region35: #{tpu_custom_call.1} parent=1 // pred_check_branch
      %81 = sbr.rel (0) target = $region37
    $region36: #{tpu_custom_call.1} parent=1 // pred_region
      %83 = dma.done [#allocation9], 256
    $region37: #{tpu_custom_call.1} parent=1 // pred_fallthru
      _
    %v85 = vld [vmem:[#allocation8] sm:$0xf]
    %v86 = vld [vmem:[#allocation8 + $0x4] sm:$0xf]
    %v87 = vld [vmem:[#allocation8 + $0x8] sm:$0xf]
    %v88 = vld [vmem:[#allocation8 + $0xc] sm:$0xf]
    %v89 = vld [vmem:[#allocation2] sm:$0xf]
    %v90 = vld [vmem:[#allocation2 + $0x4] sm:$0xf]
    %v91 = vld [vmem:[#allocation2 + $0x8] sm:$0xf]
    %v92 = vld [vmem:[#allocation2 + $0xc] sm:$0xf]
    %v97 = vunpack.c.l.b16 %v89
    %v98 = vunpack.c.l.b16 %v90
    %v99 = vunpack.c.l.b16 %v91
    %v100 = vunpack.c.l.b16 %v92
    %v101 = vpack.c.b16 %v98, %v97
    %v102 = vpack.c.b16 %v100, %v99
    %v107 = vunpack.c.l.b16 %v85
    %v108 = vunpack.c.l.b16 %v86
    %v109 = vunpack.c.l.b16 %v87
    %v110 = vunpack.c.l.b16 %v88
    %v111 = vpack.c.b16 %v108, %v107
    %v112 = vpack.c.b16 %v110, %v109
    %vm115 = vcmask 261120
    %v117 = vsel %vm115, %v101, 0
    %v120 = vsel %vm115, %v102, 0
    %122 = vmatpush.bf16.msra.mxu0 0
    %123 = vmatpush.bf16.msra.mxu0 0
    %124 = vmatpush.bf16.msra.mxu0 0
    %125 = vmatpush.bf16.msra.mxu0 0
    %126 = vmatpush.bf16.msra.mxu0 0
    %127 = vmatpush.bf16.msra.mxu0 0
    %128 = vmatpush.bf16.msra.mxu0 %v112
    %129 = vmatpush.bf16.msra.mxu0 %v111
    %130 = vmatmul.bf16.gmra.mxu0 %v117
    %v131 = vpop.f32.mrf.mxu0
    %v132 = vadd.f32 0.0, %v131
    %v133 = vpop.f32.mrf.mxu0
    %v134 = vadd.f32 0.0, %v133
    %135 = vmatmul.bf16.gmra.mxu0 %v120
    %v136 = vpop.f32.mrf.mxu0
    %v137 = vadd.f32 0.0, %v136
    %v138 = vpop.f32.mrf.mxu0
    %v139 = vadd.f32 0.0, %v138
    %140 = vdwg.mxu0
    %v141 = vmax.f32 %v132, 0.0
    %v142 = vmax.f32 %v134, 0.0
    %v143 = vmax.f32 %v137, 0.0
    %v144 = vmax.f32 %v139, 0.0
    %v145 = vld [vmem:[#allocation5] sm:$0xf]
    %v146 = vld [vmem:[#allocation5 + $0x4] sm:$0xf]
    %v149 = vunpack.c.l.b16 %v145
    %v150 = vunpack.c.l.b16 %v146
    %v151 = vpack.c.b16 %v150, %v149
    %v153 = vsel %vm115, %v151, 0
    %155 = vmatpush.bf16.msra.mxu0 0
    %156 = vmatpush.bf16.msra.mxu0 0
    %157 = vmatpush.bf16.msra.mxu0 0
    %158 = vmatpush.bf16.msra.mxu0 0
    %159 = vmatpush.bf16.msra.mxu0 0
    %160 = vmatpush.bf16.msra.mxu0 0
    %161 = vmatpush.bf16.msra.mxu0 %v112
    %162 = vmatpush.bf16.msra.mxu0 %v111
    %163 = vmatmul.bf16.gmra.mxu0 %v153
    %v164 = vpop.f32.mrf.mxu0
    %v165 = vadd.f32 0.0, %v164
    %v166 = vpop.f32.mrf.mxu0
    %v167 = vadd.f32 0.0, %v166
    %168 = vdwg.mxu0
    %v169 = vmax.f32 %v165, 0.0
    %v170 = vmax.f32 %v167, 0.0
    %v171 = vpack.c.bf16 %v141, %v141
    %v172 = vpack.c.bf16 %v142, %v142
    %v173 = vpack.c.bf16 %v143, %v143
    %v174 = vpack.c.bf16 %v144, %v144
    %v175 = vpack.c.bf16 %v169, %v169
    %v176 = vpack.c.bf16 %v170, %v170
    %v177 = vld [vmem:[#allocation7] sm:$0xf]
    %v178 = vld [vmem:[#allocation7 + $0x4] sm:$0xf]
    %v181 = vunpack.c.l.b16 %v171
    %v182 = vunpack.c.l.b16 %v172
    %v183 = vpack.c.b16 %v182, %v181
    %v185 = vsel %vm115, %v183, 0
    %v188 = vsel %vm115, %v175, 0
    %190 = vmatpush.bf16.xpose.msra.mxu0 0
    %191 = vmatpush.bf16.xpose.msra.mxu0 0
    %192 = vmatpush.bf16.xpose.msra.mxu0 0
    %193 = vmatpush.bf16.xpose.msra.mxu0 0
    %194 = vmatpush.bf16.xpose.msra.mxu0 0
    %195 = vmatpush.bf16.xpose.msra.mxu0 0
    %196 = vmatpush.bf16.xpose.msra.mxu0 0
    %197 = vmatpush.bf16.xpose.msra.mxu0 %v188
    %198 = vmatmul.bf16.gmra.mxu0 %v185
    %v199 = vpop.f32.mrf.mxu0
    %v200 = vadd.f32 0.0, %v199
    %v201 = vpop.f32.mrf.mxu0
    %v202 = vadd.f32 0.0, %v201
    %203 = vdwg.mxu0
    %v206 = vunpack.c.l.b16 %v173
    %v207 = vunpack.c.l.b16 %v174
    %v208 = vpack.c.b16 %v207, %v206
    %v210 = vsel %vm115, %v208, 0
    %v213 = vsel %vm115, %v176, 0
    %215 = vmatpush.bf16.xpose.msra.mxu0 0
    %216 = vmatpush.bf16.xpose.msra.mxu0 0
    %217 = vmatpush.bf16.xpose.msra.mxu0 0
    %218 = vmatpush.bf16.xpose.msra.mxu0 0
    %219 = vmatpush.bf16.xpose.msra.mxu0 0
    %220 = vmatpush.bf16.xpose.msra.mxu0 0
    %221 = vmatpush.bf16.xpose.msra.mxu0 0
    %222 = vmatpush.bf16.xpose.msra.mxu0 %v213
    %223 = vmatmul.bf16.gmra.mxu0 %v210
    %v224 = vpop.f32.mrf.mxu0
    %v225 = vadd.f32 0.0, %v224
    %v226 = vpop.f32.mrf.mxu0
    %v227 = vadd.f32 0.0, %v226
    %228 = vdwg.mxu0
    %vm229 = vcmask 64512
    %v230 = vsel %vm229, %v200, -inf
    %v231 = vsel %vm229, %v202, -inf
    %v232 = vmax.f32 %v230, %v231
    %v233 = vrot.slane %v232, 4
    %v234 = vmax.f32 %v232, %v233
    %v235 = vrot.slane %v234, 2
    %v236 = vmax.f32 %v234, %v235
    %v237 = vrot.slane %v236, 1
    %v238 = vmax.f32 %v236, %v237
    %v239 = vsel %vm229, %v225, -inf
    %v240 = vsel %vm229, %v227, -inf
    %v241 = vmax.f32 %v239, %v240
    %v242 = vrot.slane %v241, 4
    %v243 = vmax.f32 %v241, %v242
    %v244 = vrot.slane %v243, 2
    %v245 = vmax.f32 %v243, %v244
    %v246 = vrot.slane %v245, 1
    %v247 = vmax.f32 %v245, %v246
    %v248 = vsub.f32 %v200, %v238
    %v249 = vsub.f32 %v202, %v238
    %v250 = vsub.f32 %v225, %v247
    %v251 = vsub.f32 %v227, %v247
    %v252 = vmul.f32 %v248, 1.442695
    %v253 = vpow.pop %v252
    %v254 = vmul.f32 %v249, 1.442695
    %v255 = vpow.pop %v254
    %v256 = vmul.f32 %v250, 1.442695
    %v257 = vpow.pop %v256
    %v258 = vmul.f32 %v251, 1.442695
    %v259 = vpow.pop %v258
    %v260 = vsel %vm229, %v253, 0.0
    %v261 = vsel %vm229, %v255, 0.0
    %v262 = vadd.f32 %v260, %v261
    %v263 = vrot.slane %v262, 4
    %v264 = vadd.f32 %v262, %v263
    %v265 = vrot.slane %v264, 2
    %v266 = vadd.f32 %v264, %v265
    %v267 = vrot.slane %v266, 1
    %v268 = vadd.f32 %v266, %v267
    %v269 = vsel %vm229, %v257, 0.0
    %v270 = vsel %vm229, %v259, 0.0
    %v271 = vadd.f32 %v269, %v270
    %v272 = vrot.slane %v271, 4
    %v273 = vadd.f32 %v271, %v272
    %v274 = vrot.slane %v273, 2
    %v275 = vadd.f32 %v273, %v274
    %v276 = vrot.slane %v275, 1
    %v277 = vadd.f32 %v275, %v276
    %v278 = vld [vmem:[%s3] sm:$0x1]
    %v279 = vld [vmem:[%s3 + $0x1] sm:$0x1]
    %v280 = vmul.f32 %v278, %v268
    %v281 = vmul.f32 %v279, %v277
    %v282 = vadd.f32 %v280, 1e-10
    %v283 = vadd.f32 %v281, 1e-10
    %v284 = vrcp.pop %v282
    %v285 = vrcp.pop %v283
    %v286 = vmul.f32 %v278, %v284
    %v287 = vmul.f32 %v279, %v285
    %v290 = vperm.slane %v286, 0
    %v291 = vperm.slane %v287, 0
    %v294 = vmul.f32 %v253, %v290
    %v295 = vmul.f32 %v255, %v290
    %v296 = vmul.f32 %v257, %v291
    %v297 = vmul.f32 %v259, %v291
    %v298 = vpack.c.bf16 %v294, %v294
    %v299 = vpack.c.bf16 %v295, %v295
    %v300 = vpack.c.bf16 %v296, %v296
    %v301 = vpack.c.bf16 %v297, %v297
    %v304 = vunpack.c.l.b16 %v298
    %v305 = vunpack.c.l.b16 %v299
    %v306 = vpack.c.b16 %v305, %v304
    %v308 = vsel %vm229, %v306, 0
    %vm310 = vcmask 1043456
    %v312 = vsel %vm310, %v177, 0
    %314 = vmatpush.bf16.msra.mxu0 0
    %315 = vmatpush.bf16.msra.mxu0 0
    %316 = vmatpush.bf16.msra.mxu0 0
    %317 = vmatpush.bf16.msra.mxu0 0
    %318 = vmatpush.bf16.msra.mxu0 0
    %319 = vmatpush.bf16.msra.mxu0 0
    %320 = vmatpush.bf16.msra.mxu0 0
    %321 = vmatpush.bf16.msra.mxu0 %v312
    %322 = vmatmul.bf16.gmra.mxu0 %v308
    %v323 = vpop.f32.mrf.mxu0
    %v324 = vadd.f32 0.0, %v323
    %v325 = vpop.f32.mrf.mxu0
    %v326 = vadd.f32 0.0, %v325
    %327 = vdwg.mxu0
    %v330 = vunpack.c.l.b16 %v300
    %v331 = vunpack.c.l.b16 %v301
    %v332 = vpack.c.b16 %v331, %v330
    %v334 = vsel %vm229, %v332, 0
    %v337 = vsel %vm310, %v178, 0
    %339 = vmatpush.bf16.msra.mxu0 0
    %340 = vmatpush.bf16.msra.mxu0 0
    %341 = vmatpush.bf16.msra.mxu0 0
    %342 = vmatpush.bf16.msra.mxu0 0
    %343 = vmatpush.bf16.msra.mxu0 0
    %344 = vmatpush.bf16.msra.mxu0 0
    %345 = vmatpush.bf16.msra.mxu0 0
    %346 = vmatpush.bf16.msra.mxu0 %v337
    %347 = vmatmul.bf16.gmra.mxu0 %v334
    %v348 = vpop.f32.mrf.mxu0
    %v349 = vadd.f32 0.0, %v348
    %v350 = vpop.f32.mrf.mxu0
    %v351 = vadd.f32 0.0, %v350
    %352 = vdwg.mxu0
    %353 = vst.msk [vmem:[#allocation10] sm:$0xff] %vm115, %v324
    %354 = vst.msk [vmem:[#allocation10 + $0x8] sm:$0xff] %vm115, %v326
    %355 = vst.msk [vmem:[#allocation10 + $0x10] sm:$0xff] %vm115, %v349
    %356 = vst.msk [vmem:[#allocation10 + $0x18] sm:$0xff] %vm115, %v351
    // Predicated region
    $region38: #{tpu_custom_call.1} parent=1 // pred_check
      _
    $region39: #{tpu_custom_call.1} parent=1 // pred_check_branch
      %358 = sbr.rel (0) target = $region41
    $region40: #{tpu_custom_call.1} parent=1 // pred_region
      %360 = vsyncadd [#allocation4], 0
      %s361 = sshll.u32 [#allocation10], 4
      %s362 = int_to_ptr.vmem [resolvable:$true] %s361
      %s363 = sshll.u32 %s5, 4
      %s364 = int_to_ptr.hbm [resolvable:$true] %s363
      %369 = dma.vmem_to_hbm [thread:$0]  %s362, 512, %s364, [#allocation4], 128, 128, 8
    $region41: #{tpu_custom_call.1} parent=1 // pred_fallthru
      _
    // Predicated region
    $region42: #{tpu_custom_call.1} parent=1 // pred_check
      _
    $region43: #{tpu_custom_call.1} parent=1 // pred_check_branch
      %371 = sbr.rel (0) target = $region45
    $region44: #{tpu_custom_call.1} parent=1 // pred_region
      %373 = dma.done [#allocation4], 512
    $region45: #{tpu_custom_call.1} parent=1 // pred_fallthru
      _
    %374 = vsyncpa [#allocation3], 1
    %375 = vsyncpa [#allocation6], 1
    %376 = vsyncpa [#allocation9], 1
    %377 = vsyncpa [#allocation4], 1

</llo_original>
